<compile_context>
chip_gen: v6e
topology: v6e:2x2x1
jax: 0.10.0
libtpu: 0.0.40
codegen_flags: <defaults>
</compile_context>

<pallas_src>
import jax
import jax.numpy as jnp
import numpy as np
from jax.experimental import pallas as pl
from jax.experimental.pallas import tpu as pltpu  # noqa: F401  (TPU backend)


def _lstm_kernel(x_ref, wih_ref, whh_ref, b_ref, wfc_ref, bfc_ref, out_ref):
    """Whole-sequence LSTM + final FC in one invocation.

    x_ref:   (S, B, I)   time-major inputs (fully VMEM resident)
    wih_ref: (I, 4H)     weight_ih^T
    whh_ref: (H, 4H)     weight_hh^T
    b_ref:   (1, 4H)     b_ih + b_hh (pre-summed)
    wfc_ref: (H, O)      fc.weight^T
    bfc_ref: (1, O)
    out_ref: (B, O)
    """
    S, B, I = x_ref.shape
    H = whh_ref.shape[0]

    # One big MXU pass: input projections (+ bias) for every timestep at once.
    x_all = x_ref[...].reshape(S * B, I)                         # (S*B, I)
    xproj = (
        jnp.dot(x_all, wih_ref[...], preferred_element_type=jnp.float32)
        + b_ref[...]
    ).reshape(S, B, 4 * H)                                       # (S, B, 4H)

    whh = whh_ref[...]                                           # (H, 4H)

    h = jnp.zeros((B, H), jnp.float32)
    c = jnp.zeros((B, H), jnp.float32)

    # Static unroll over time (S is small); only one matmul per step.
    for t in range(S):
        gates = xproj[t] + jnp.dot(h, whh,
                                   preferred_element_type=jnp.float32)  # (B, 4H)

        # Two full-vreg EUP passes, then slice the H-wide gate bands.
        sig = jax.nn.sigmoid(gates)
        tnh = jnp.tanh(gates)

        ingate     = sig[:, 0 * H:1 * H]
        forgetgate = sig[:, 1 * H:2 * H]
        cellgate   = tnh[:, 2 * H:3 * H]
        outgate    = sig[:, 3 * H:4 * H]

        c = forgetgate * c + ingate * cellgate
        h = outgate * jnp.tanh(c)

    out_ref[...] = (
        jnp.dot(h, wfc_ref[...], preferred_element_type=jnp.float32)
        + bfc_ref[...]
    )


def simple_lstm_forward(x, params):
    """x: (batch, seq, input_size) float32 -> (batch, output_size)."""
    w_ih, w_hh, b_ih, b_hh, w_fc, b_fc = params
    B, S, I = x.shape
    H4 = w_ih.shape[0]
    O = w_fc.shape[0]

    # Glue: time-major layout, pre-transposed weights, pre-summed bias.
    x_tm = jnp.transpose(x, (1, 0, 2))          # (S, B, I)
    wih_t = w_ih.T                              # (I, 4H)
    whh_t = w_hh.T                              # (H, 4H)
    b_cat = (b_ih + b_hh).reshape(1, H4)        # (1, 4H)
    wfc_t = w_fc.T                              # (H, O)
    bfc_r = b_fc.reshape(1, O)                  # (1, O)

    # No grid: everything (x, weights, output) fits comfortably in VMEM as
    # full-array blocks; the recurrence runs in a single invocation.
    out = pl.pallas_call(
        _lstm_kernel,
        out_shape=jax.ShapeDtypeStruct((B, O), jnp.float32),
    )(x_tm, wih_t, whh_t, b_cat, wfc_t, bfc_r)
    return out


def reference_forward(x, params):
    """Plain-JAX reference of the intended LSTM forward."""
    w_ih, w_hh, b_ih, b_hh, w_fc, b_fc = params
    B, S, _ = x.shape
    H = w_hh.shape[1]
    h = jnp.zeros((B, H), jnp.float32)
    c = jnp.zeros((B, H), jnp.float32)
    for t in range(S):
        gates = x[:, t, :] @ w_ih.T + b_ih + h @ w_hh.T + b_hh
        i, f, g, o = jnp.split(gates, 4, axis=1)
        i, f, g, o = jax.nn.sigmoid(i), jax.nn.sigmoid(f), jnp.tanh(g), jax.nn.sigmoid(o)
        c = f * c + i * g
        h = o * jnp.tanh(c)
    return h @ w_fc.T + b_fc


if __name__ == "__main__":
    batch, seq, input_size, hidden_size, output_size = 2, 8, 16, 32, 8

    key = jax.random.PRNGKey(0)
    ks = jax.random.split(key, 7)
    x = jax.random.normal(ks[0], (batch, seq, input_size), jnp.float32)

    # Deterministic parameter init (matches torch.randn-style shapes).
    w_ih = jax.random.normal(ks[1], (4 * hidden_size, input_size), jnp.float32)
    w_hh = jax.random.normal(ks[2], (4 * hidden_size, hidden_size), jnp.float32)
    b_ih = jax.random.normal(ks[3], (4 * hidden_size,), jnp.float32)
    b_hh = jax.random.normal(ks[4], (4 * hidden_size,), jnp.float32)
    # fc = nn.Linear(hidden_size, output_size): weight (O, H), bias (O,)
    w_fc = jax.random.normal(ks[5], (output_size, hidden_size), jnp.float32) * 0.1
    b_fc = jax.random.normal(ks[6], (output_size,), jnp.float32) * 0.1

    params = (w_ih, w_hh, b_ih, b_hh, w_fc, b_fc)

    out = simple_lstm_forward(x, params)
    out = jax.block_until_ready(out)

    ref = reference_forward(x, params)
    np.testing.assert_allclose(np.asarray(out), np.asarray(ref),
                               rtol=1e-4, atol=1e-4)
    print("KERNEL_OK")
</pallas_src>

<mosaic_0001>
module attributes {stable_mosaic.version = 11 : i64} {
  func.func @_lstm_kernel(%arg0: memref<8x2x16xf32, #tpu.memory_space<vmem>>, %arg1: memref<16x128xf32, #tpu.memory_space<vmem>>, %arg2: memref<32x128xf32, #tpu.memory_space<vmem>>, %arg3: memref<1x128xf32, #tpu.memory_space<vmem>>, %arg4: memref<32x8xf32, #tpu.memory_space<vmem>>, %arg5: memref<1x8xf32, #tpu.memory_space<vmem>>, %arg6: memref<2x8xf32, #tpu.memory_space<vmem>>) attributes {dimension_semantics = [], scalar_prefetch = 0 : i64, scratch_operands = 0 : i64, tpu.core_type = #tpu.core_type<tc>} {
    %c0 = arith.constant 0 : index
    %c0_0 = arith.constant 0 : index
    %c0_1 = arith.constant 0 : index
    %0 = vector.load %arg0[%c0, %c0_0, %c0_1] : memref<8x2x16xf32, #tpu.memory_space<vmem>>, vector<8x2x16xf32>
    %1 = vector.shape_cast %0 : vector<8x2x16xf32> to vector<16x16xf32>
    %c0_2 = arith.constant 0 : index
    %c0_3 = arith.constant 0 : index
    %2 = vector.load %arg1[%c0_2, %c0_3] : memref<16x128xf32, #tpu.memory_space<vmem>>, vector<16x128xf32>
    %cst = arith.constant dense<0.000000e+00> : vector<16x128xf32>
    %3 = tpu.matmul %1, %2, %cst {dimension_numbers = #tpu.dot_dimension_numbers<[1], [0], [0], [1], [0, 0, 1, 1], [], []>} : vector<16x16xf32>, vector<16x128xf32>, vector<16x128xf32> -> vector<16x128xf32>
    %c0_4 = arith.constant 0 : index
    %c0_5 = arith.constant 0 : index
    %4 = vector.load %arg3[%c0_4, %c0_5] : memref<1x128xf32, #tpu.memory_space<vmem>>, vector<1x128xf32>
    %5 = vector.broadcast %4 : vector<1x128xf32> to vector<16x128xf32>
    %6 = arith.addf %3, %5 : vector<16x128xf32>
    %7 = vector.shape_cast %6 : vector<16x128xf32> to vector<8x2x128xf32>
    %c0_6 = arith.constant 0 : index
    %c0_7 = arith.constant 0 : index
    %8 = vector.load %arg2[%c0_6, %c0_7] : memref<32x128xf32, #tpu.memory_space<vmem>>, vector<32x128xf32>
    %cst_8 = arith.constant 0.000000e+00 : f32
    %9 = vector.broadcast %cst_8 : f32 to vector<2x32xf32>
    %cst_9 = arith.constant 0.000000e+00 : f32
    %10 = vector.broadcast %cst_9 : f32 to vector<2x32xf32>
    %11 = vector.extract_strided_slice %7 {offsets = [0, 0, 0], sizes = [1, 2, 128], strides = [1, 1, 1]} : vector<8x2x128xf32> to vector<1x2x128xf32>
    %12 = vector.shape_cast %11 : vector<1x2x128xf32> to vector<2x128xf32>
    %cst_10 = arith.constant dense<0.000000e+00> : vector<2x128xf32>
    %13 = tpu.matmul %9, %8, %cst_10 {dimension_numbers = #tpu.dot_dimension_numbers<[1], [0], [0], [1], [0, 0, 1, 1], [], []>} : vector<2x32xf32>, vector<32x128xf32>, vector<2x128xf32> -> vector<2x128xf32>
    %14 = arith.addf %12, %13 : vector<2x128xf32>
    %15 = arith.negf %14 : vector<2x128xf32>
    %16 = math.exp %15 : vector<2x128xf32>
    %cst_11 = arith.constant 1.000000e+00 : f32
    %17 = vector.broadcast %cst_11 : f32 to vector<2x128xf32>
    %18 = arith.addf %17, %16 : vector<2x128xf32>
    %19 = arith.divf %17, %18 : vector<2x128xf32>
    %20 = math.tanh %14 : vector<2x128xf32>
    %21 = vector.extract_strided_slice %19 {offsets = [0, 0], sizes = [2, 32], strides = [1, 1]} : vector<2x128xf32> to vector<2x32xf32>
    %22 = vector.extract_strided_slice %19 {offsets = [0, 32], sizes = [2, 32], strides = [1, 1]} : vector<2x128xf32> to vector<2x32xf32>
    %23 = vector.extract_strided_slice %20 {offsets = [0, 64], sizes = [2, 32], strides = [1, 1]} : vector<2x128xf32> to vector<2x32xf32>
    %24 = vector.extract_strided_slice %19 {offsets = [0, 96], sizes = [2, 32], strides = [1, 1]} : vector<2x128xf32> to vector<2x32xf32>
    %25 = arith.mulf %22, %10 : vector<2x32xf32>
    %26 = arith.mulf %21, %23 : vector<2x32xf32>
    %27 = arith.addf %25, %26 : vector<2x32xf32>
    %28 = math.tanh %27 : vector<2x32xf32>
    %29 = arith.mulf %24, %28 : vector<2x32xf32>
    %30 = vector.extract_strided_slice %7 {offsets = [1, 0, 0], sizes = [1, 2, 128], strides = [1, 1, 1]} : vector<8x2x128xf32> to vector<1x2x128xf32>
    %31 = vector.shape_cast %30 : vector<1x2x128xf32> to vector<2x128xf32>
    %cst_12 = arith.constant dense<0.000000e+00> : vector<2x128xf32>
    %32 = tpu.matmul %29, %8, %cst_12 {dimension_numbers = #tpu.dot_dimension_numbers<[1], [0], [0], [1], [0, 0, 1, 1], [], []>} : vector<2x32xf32>, vector<32x128xf32>, vector<2x128xf32> -> vector<2x128xf32>
    %33 = arith.addf %31, %32 : vector<2x128xf32>
    %34 = arith.negf %33 : vector<2x128xf32>
    %35 = math.exp %34 : vector<2x128xf32>
    %cst_13 = arith.constant 1.000000e+00 : f32
    %36 = vector.broadcast %cst_13 : f32 to vector<2x128xf32>
    %37 = arith.addf %36, %35 : vector<2x128xf32>
    %38 = arith.divf %36, %37 : vector<2x128xf32>
    %39 = math.tanh %33 : vector<2x128xf32>
    %40 = vector.extract_strided_slice %38 {offsets = [0, 0], sizes = [2, 32], strides = [1, 1]} : vector<2x128xf32> to vector<2x32xf32>
    %41 = vector.extract_strided_slice %38 {offsets = [0, 32], sizes = [2, 32], strides = [1, 1]} : vector<2x128xf32> to vector<2x32xf32>
    %42 = vector.extract_strided_slice %39 {offsets = [0, 64], sizes = [2, 32], strides = [1, 1]} : vector<2x128xf32> to vector<2x32xf32>
    %43 = vector.extract_strided_slice %38 {offsets = [0, 96], sizes = [2, 32], strides = [1, 1]} : vector<2x128xf32> to vector<2x32xf32>
    %44 = arith.mulf %41, %27 : vector<2x32xf32>
    %45 = arith.mulf %40, %42 : vector<2x32xf32>
    %46 = arith.addf %44, %45 : vector<2x32xf32>
    %47 = math.tanh %46 : vector<2x32xf32>
    %48 = arith.mulf %43, %47 : vector<2x32xf32>
    %49 = vector.extract_strided_slice %7 {offsets = [2, 0, 0], sizes = [1, 2, 128], strides = [1, 1, 1]} : vector<8x2x128xf32> to vector<1x2x128xf32>
    %50 = vector.shape_cast %49 : vector<1x2x128xf32> to vector<2x128xf32>
    %cst_14 = arith.constant dense<0.000000e+00> : vector<2x128xf32>
    %51 = tpu.matmul %48, %8, %cst_14 {dimension_numbers = #tpu.dot_dimension_numbers<[1], [0], [0], [1], [0, 0, 1, 1], [], []>} : vector<2x32xf32>, vector<32x128xf32>, vector<2x128xf32> -> vector<2x128xf32>
    %52 = arith.addf %50, %51 : vector<2x128xf32>
    %53 = arith.negf %52 : vector<2x128xf32>
    %54 = math.exp %53 : vector<2x128xf32>
    %cst_15 = arith.constant 1.000000e+00 : f32
    %55 = vector.broadcast %cst_15 : f32 to vector<2x128xf32>
    %56 = arith.addf %55, %54 : vector<2x128xf32>
    %57 = arith.divf %55, %56 : vector<2x128xf32>
    %58 = math.tanh %52 : vector<2x128xf32>
    %59 = vector.extract_strided_slice %57 {offsets = [0, 0], sizes = [2, 32], strides = [1, 1]} : vector<2x128xf32> to vector<2x32xf32>
    %60 = vector.extract_strided_slice %57 {offsets = [0, 32], sizes = [2, 32], strides = [1, 1]} : vector<2x128xf32> to vector<2x32xf32>
    %61 = vector.extract_strided_slice %58 {offsets = [0, 64], sizes = [2, 32], strides = [1, 1]} : vector<2x128xf32> to vector<2x32xf32>
    %62 = vector.extract_strided_slice %57 {offsets = [0, 96], sizes = [2, 32], strides = [1, 1]} : vector<2x128xf32> to vector<2x32xf32>
    %63 = arith.mulf %60, %46 : vector<2x32xf32>
    %64 = arith.mulf %59, %61 : vector<2x32xf32>
    %65 = arith.addf %63, %64 : vector<2x32xf32>
    %66 = math.tanh %65 : vector<2x32xf32>
    %67 = arith.mulf %62, %66 : vector<2x32xf32>
    %68 = vector.extract_strided_slice %7 {offsets = [3, 0, 0], sizes = [1, 2, 128], strides = [1, 1, 1]} : vector<8x2x128xf32> to vector<1x2x128xf32>
    %69 = vector.shape_cast %68 : vector<1x2x128xf32> to vector<2x128xf32>
    %cst_16 = arith.constant dense<0.000000e+00> : vector<2x128xf32>
    %70 = tpu.matmul %67, %8, %cst_16 {dimension_numbers = #tpu.dot_dimension_numbers<[1], [0], [0], [1], [0, 0, 1, 1], [], []>} : vector<2x32xf32>, vector<32x128xf32>, vector<2x128xf32> -> vector<2x128xf32>
    %71 = arith.addf %69, %70 : vector<2x128xf32>
    %72 = arith.negf %71 : vector<2x128xf32>
    %73 = math.exp %72 : vector<2x128xf32>
    %cst_17 = arith.constant 1.000000e+00 : f32
    %74 = vector.broadcast %cst_17 : f32 to vector<2x128xf32>
    %75 = arith.addf %74, %73 : vector<2x128xf32>
    %76 = arith.divf %74, %75 : vector<2x128xf32>
    %77 = math.tanh %71 : vector<2x128xf32>
    %78 = vector.extract_strided_slice %76 {offsets = [0, 0], sizes = [2, 32], strides = [1, 1]} : vector<2x128xf32> to vector<2x32xf32>
    %79 = vector.extract_strided_slice %76 {offsets = [0, 32], sizes = [2, 32], strides = [1, 1]} : vector<2x128xf32> to vector<2x32xf32>
    %80 = vector.extract_strided_slice %77 {offsets = [0, 64], sizes = [2, 32], strides = [1, 1]} : vector<2x128xf32> to vector<2x32xf32>
    %81 = vector.extract_strided_slice %76 {offsets = [0, 96], sizes = [2, 32], strides = [1, 1]} : vector<2x128xf32> to vector<2x32xf32>
    %82 = arith.mulf %79, %65 : vector<2x32xf32>
    %83 = arith.mulf %78, %80 : vector<2x32xf32>
    %84 = arith.addf %82, %83 : vector<2x32xf32>
    %85 = math.tanh %84 : vector<2x32xf32>
    %86 = arith.mulf %81, %85 : vector<2x32xf32>
    %87 = vector.extract_strided_slice %7 {offsets = [4, 0, 0], sizes = [1, 2, 128], strides = [1, 1, 1]} : vector<8x2x128xf32> to vector<1x2x128xf32>
    %88 = vector.shape_cast %87 : vector<1x2x128xf32> to vector<2x128xf32>
    %cst_18 = arith.constant dense<0.000000e+00> : vector<2x128xf32>
    %89 = tpu.matmul %86, %8, %cst_18 {dimension_numbers = #tpu.dot_dimension_numbers<[1], [0], [0], [1], [0, 0, 1, 1], [], []>} : vector<2x32xf32>, vector<32x128xf32>, vector<2x128xf32> -> vector<2x128xf32>
    %90 = arith.addf %88, %89 : vector<2x128xf32>
    %91 = arith.negf %90 : vector<2x128xf32>
    %92 = math.exp %91 : vector<2x128xf32>
    %cst_19 = arith.constant 1.000000e+00 : f32
    %93 = vector.broadcast %cst_19 : f32 to vector<2x128xf32>
    %94 = arith.addf %93, %92 : vector<2x128xf32>
    %95 = arith.divf %93, %94 : vector<2x128xf32>
    %96 = math.tanh %90 : vector<2x128xf32>
    %97 = vector.extract_strided_slice %95 {offsets = [0, 0], sizes = [2, 32], strides = [1, 1]} : vector<2x128xf32> to vector<2x32xf32>
    %98 = vector.extract_strided_slice %95 {offsets = [0, 32], sizes = [2, 32], strides = [1, 1]} : vector<2x128xf32> to vector<2x32xf32>
    %99 = vector.extract_strided_slice %96 {offsets = [0, 64], sizes = [2, 32], strides = [1, 1]} : vector<2x128xf32> to vector<2x32xf32>
    %100 = vector.extract_strided_slice %95 {offsets = [0, 96], sizes = [2, 32], strides = [1, 1]} : vector<2x128xf32> to vector<2x32xf32>
    %101 = arith.mulf %98, %84 : vector<2x32xf32>
    %102 = arith.mulf %97, %99 : vector<2x32xf32>
    %103 = arith.addf %101, %102 : vector<2x32xf32>
    %104 = math.tanh %103 : vector<2x32xf32>
    %105 = arith.mulf %100, %104 : vector<2x32xf32>
    %106 = vector.extract_strided_slice %7 {offsets = [5, 0, 0], sizes = [1, 2, 128], strides = [1, 1, 1]} : vector<8x2x128xf32> to vector<1x2x128xf32>
    %107 = vector.shape_cast %106 : vector<1x2x128xf32> to vector<2x128xf32>
    %cst_20 = arith.constant dense<0.000000e+00> : vector<2x128xf32>
    %108 = tpu.matmul %105, %8, %cst_20 {dimension_numbers = #tpu.dot_dimension_numbers<[1], [0], [0], [1], [0, 0, 1, 1], [], []>} : vector<2x32xf32>, vector<32x128xf32>, vector<2x128xf32> -> vector<2x128xf32>
    %109 = arith.addf %107, %108 : vector<2x128xf32>
    %110 = arith.negf %109 : vector<2x128xf32>
    %111 = math.exp %110 : vector<2x128xf32>
    %cst_21 = arith.constant 1.000000e+00 : f32
    %112 = vector.broadcast %cst_21 : f32 to vector<2x128xf32>
    %113 = arith.addf %112, %111 : vector<2x128xf32>
    %114 = arith.divf %112, %113 : vector<2x128xf32>
    %115 = math.tanh %109 : vector<2x128xf32>
    %116 = vector.extract_strided_slice %114 {offsets = [0, 0], sizes = [2, 32], strides = [1, 1]} : vector<2x128xf32> to vector<2x32xf32>
    %117 = vector.extract_strided_slice %114 {offsets = [0, 32], sizes = [2, 32], strides = [1, 1]} : vector<2x128xf32> to vector<2x32xf32>
    %118 = vector.extract_strided_slice %115 {offsets = [0, 64], sizes = [2, 32], strides = [1, 1]} : vector<2x128xf32> to vector<2x32xf32>
    %119 = vector.extract_strided_slice %114 {offsets = [0, 96], sizes = [2, 32], strides = [1, 1]} : vector<2x128xf32> to vector<2x32xf32>
    %120 = arith.mulf %117, %103 : vector<2x32xf32>
    %121 = arith.mulf %116, %118 : vector<2x32xf32>
    %122 = arith.addf %120, %121 : vector<2x32xf32>
    %123 = math.tanh %122 : vector<2x32xf32>
    %124 = arith.mulf %119, %123 : vector<2x32xf32>
    %125 = vector.extract_strided_slice %7 {offsets = [6, 0, 0], sizes = [1, 2, 128], strides = [1, 1, 1]} : vector<8x2x128xf32> to vector<1x2x128xf32>
    %126 = vector.shape_cast %125 : vector<1x2x128xf32> to vector<2x128xf32>
    %cst_22 = arith.constant dense<0.000000e+00> : vector<2x128xf32>
    %127 = tpu.matmul %124, %8, %cst_22 {dimension_numbers = #tpu.dot_dimension_numbers<[1], [0], [0], [1], [0, 0, 1, 1], [], []>} : vector<2x32xf32>, vector<32x128xf32>, vector<2x128xf32> -> vector<2x128xf32>
    %128 = arith.addf %126, %127 : vector<2x128xf32>
    %129 = arith.negf %128 : vector<2x128xf32>
    %130 = math.exp %129 : vector<2x128xf32>
    %cst_23 = arith.constant 1.000000e+00 : f32
    %131 = vector.broadcast %cst_23 : f32 to vector<2x128xf32>
    %132 = arith.addf %131, %130 : vector<2x128xf32>
    %133 = arith.divf %131, %132 : vector<2x128xf32>
    %134 = math.tanh %128 : vector<2x128xf32>
    %135 = vector.extract_strided_slice %133 {offsets = [0, 0], sizes = [2, 32], strides = [1, 1]} : vector<2x128xf32> to vector<2x32xf32>
    %136 = vector.extract_strided_slice %133 {offsets = [0, 32], sizes = [2, 32], strides = [1, 1]} : vector<2x128xf32> to vector<2x32xf32>
    %137 = vector.extract_strided_slice %134 {offsets = [0, 64], sizes = [2, 32], strides = [1, 1]} : vector<2x128xf32> to vector<2x32xf32>
    %138 = vector.extract_strided_slice %133 {offsets = [0, 96], sizes = [2, 32], strides = [1, 1]} : vector<2x128xf32> to vector<2x32xf32>
    %139 = arith.mulf %136, %122 : vector<2x32xf32>
    %140 = arith.mulf %135, %137 : vector<2x32xf32>
    %141 = arith.addf %139, %140 : vector<2x32xf32>
    %142 = math.tanh %141 : vector<2x32xf32>
    %143 = arith.mulf %138, %142 : vector<2x32xf32>
    %144 = vector.extract_strided_slice %7 {offsets = [7, 0, 0], sizes = [1, 2, 128], strides = [1, 1, 1]} : vector<8x2x128xf32> to vector<1x2x128xf32>
    %145 = vector.shape_cast %144 : vector<1x2x128xf32> to vector<2x128xf32>
    %cst_24 = arith.constant dense<0.000000e+00> : vector<2x128xf32>
    %146 = tpu.matmul %143, %8, %cst_24 {dimension_numbers = #tpu.dot_dimension_numbers<[1], [0], [0], [1], [0, 0, 1, 1], [], []>} : vector<2x32xf32>, vector<32x128xf32>, vector<2x128xf32> -> vector<2x128xf32>
    %147 = arith.addf %145, %146 : vector<2x128xf32>
    %148 = arith.negf %147 : vector<2x128xf32>
    %149 = math.exp %148 : vector<2x128xf32>
    %cst_25 = arith.constant 1.000000e+00 : f32
    %150 = vector.broadcast %cst_25 : f32 to vector<2x128xf32>
    %151 = arith.addf %150, %149 : vector<2x128xf32>
    %152 = arith.divf %150, %151 : vector<2x128xf32>
    %153 = math.tanh %147 : vector<2x128xf32>
    %154 = vector.extract_strided_slice %152 {offsets = [0, 0], sizes = [2, 32], strides = [1, 1]} : vector<2x128xf32> to vector<2x32xf32>
    %155 = vector.extract_strided_slice %152 {offsets = [0, 32], sizes = [2, 32], strides = [1, 1]} : vector<2x128xf32> to vector<2x32xf32>
    %156 = vector.extract_strided_slice %153 {offsets = [0, 64], sizes = [2, 32], strides = [1, 1]} : vector<2x128xf32> to vector<2x32xf32>
    %157 = vector.extract_strided_slice %152 {offsets = [0, 96], sizes = [2, 32], strides = [1, 1]} : vector<2x128xf32> to vector<2x32xf32>
    %158 = arith.mulf %155, %141 : vector<2x32xf32>
    %159 = arith.mulf %154, %156 : vector<2x32xf32>
    %160 = arith.addf %158, %159 : vector<2x32xf32>
    %161 = math.tanh %160 : vector<2x32xf32>
    %162 = arith.mulf %157, %161 : vector<2x32xf32>
    %c0_26 = arith.constant 0 : index
    %c0_27 = arith.constant 0 : index
    %163 = vector.load %arg4[%c0_26, %c0_27] : memref<32x8xf32, #tpu.memory_space<vmem>>, vector<32x8xf32>
    %cst_28 = arith.constant dense<0.000000e+00> : vector<2x8xf32>
    %164 = tpu.matmul %162, %163, %cst_28 {dimension_numbers = #tpu.dot_dimension_numbers<[1], [0], [0], [1], [0, 0, 1, 1], [], []>} : vector<2x32xf32>, vector<32x8xf32>, vector<2x8xf32> -> vector<2x8xf32>
    %c0_29 = arith.constant 0 : index
    %c0_30 = arith.constant 0 : index
    %165 = vector.load %arg5[%c0_29, %c0_30] : memref<1x8xf32, #tpu.memory_space<vmem>>, vector<1x8xf32>
    %166 = vector.broadcast %165 : vector<1x8xf32> to vector<2x8xf32>
    %167 = arith.addf %164, %166 : vector<2x8xf32>
    %c0_31 = arith.constant 0 : index
    %c0_32 = arith.constant 0 : index
    %168 = vector.load %arg6[%c0_31, %c0_32] : memref<2x8xf32, #tpu.memory_space<vmem>>, vector<2x8xf32>
    tpu.vector_store %arg6[%c0_31, %c0_32], %167 {strides = array<i32>} : memref<2x8xf32, #tpu.memory_space<vmem>>, vector<2x8xf32>,
    return
  }
}

</mosaic_0001>

<llo_original>
// kernel: tpu_custom_call.1
$region0: #{tpu_custom_call.1}
  #allocation0 [shape = 'u32[]', space=smem, size = 0x4, offset = 0x4, fixed_abs, tag = 'smem constant byte address 0x4 - core index']
  #allocation1 [shape = 'u32[144,128]{1,0:T(1,128)}', space=vmem, size = 0x12000, scoped, tag = 'internal scratch']
  %s0 = inlined_call_operand.hbm [shape: f32[8,2,16], index: 0, kind: input, shape index: {}]
  %s1 = inlined_call_operand.hbm [shape: f32[16,128], index: 1, kind: input, shape index: {}]
  %s2 = inlined_call_operand.vmem [shape: f32[32,128], index: 2, kind: input, shape index: {}]
  %s3 = inlined_call_operand.vmem [shape: f32[1,128], index: 3, kind: input, shape index: {}]
  %s4 = inlined_call_operand.vmem [shape: f32[32,8], index: 4, kind: input, shape index: {}]
  %s5 = inlined_call_operand.vmem [shape: f32[1,8], index: 5, kind: input, shape index: {}]
  %s6 = inlined_call_operand.hbm [shape: f32[2,8], index: 6, kind: output, shape index: {}]
  %s7 = sld [smem:[#allocation0]]
  $region42: #{tpu_custom_call.1} parent=0
    _
  %s9 = ssub.s32 1, %s7
  %s10 = scalar_select 0, %s9, %s7
  $region1: #{tpu_custom_call.1} parent=0
    #allocation2 [shape = 'u8[8192]{0}', space=vmem, size = 0x2000, scoped, tag = 'input window, operand 0, single buffered']
    #allocation3 [shape = 's32[1]{0}', space=sflag, size = 0x4, scoped, tag = 'scoped memory for tpu_custom_call.1']
    #allocation4 [shape = 's32[1]{0}', space=sflag, size = 0x4, scoped, tag = 'scoped memory for tpu_custom_call.1']
    #allocation5 [shape = 'u8[8192]{0}', space=vmem, size = 0x2000, scoped, tag = 'input window, operand 1, single buffered']
    #allocation6 [shape = 's32[1]{0}', space=sflag, size = 0x4, scoped, tag = 'scoped memory for tpu_custom_call.1']
    #allocation7 [shape = 'u8[1024]{0}', space=vmem, size = 0x400, scoped, tag = 'output window, operand 0, single buffered']
    %11 = vsyncpa [#allocation3], 0
    %12 = vsyncpa [#allocation6], 0
    %13 = vsyncpa [#allocation4], 0
    // Predicated region
    $region2: #{tpu_custom_call.1} parent=1 // pred_check
      _
    $region3: #{tpu_custom_call.1} parent=1 // pred_check_branch
      %15 = sbr.rel (0) target = $region5
    $region4: #{tpu_custom_call.1} parent=1 // pred_region
      %s17 = ssub.s32 256, 256
      %18 = vsyncadd [#allocation3], %s17
      %s19 = sshll.u32 [#allocation2], 4
      %s20 = int_to_ptr.vmem [resolvable:$true] %s19
      %25 = dma.hbm_to_vmem [thread:$0]  %s0, 256, %s20, [#allocation3], 32, 32, 2
    $region5: #{tpu_custom_call.1} parent=1 // pred_fallthru
      _
    // Predicated region
    $region6: #{tpu_custom_call.1} parent=1 // pred_check
      _
    $region7: #{tpu_custom_call.1} parent=1 // pred_check_branch
      %27 = sbr.rel (0) target = $region9
    $region8: #{tpu_custom_call.1} parent=1 // pred_region
      %s29 = ssub.s32 256, 256
      %30 = vsyncadd [#allocation6], %s29
      %s31 = sshll.u32 [#allocation5], 4
      %s32 = int_to_ptr.vmem [resolvable:$true] %s31
      %37 = dma.hbm_to_vmem [thread:$0]  %s1, 256, %s32, [#allocation6], 128, 128, 8
    $region9: #{tpu_custom_call.1} parent=1 // pred_fallthru
      _
    // Predicated region
    $region10: #{tpu_custom_call.1} parent=1 // pred_check
      _
    $region11: #{tpu_custom_call.1} parent=1 // pred_check_branch
      %39 = sbr.rel (0) target = $region13
    $region12: #{tpu_custom_call.1} parent=1 // pred_region
      _
    $region13: #{tpu_custom_call.1} parent=1 // pred_fallthru
      _
    // Predicated region
    $region14: #{tpu_custom_call.1} parent=1 // pred_check
      _
    $region15: #{tpu_custom_call.1} parent=1 // pred_check_branch
      %41 = sbr.rel (0) target = $region17
    $region16: #{tpu_custom_call.1} parent=1 // pred_region
      _
    $region17: #{tpu_custom_call.1} parent=1 // pred_fallthru
      _
    // Predicated region
    $region18: #{tpu_custom_call.1} parent=1 // pred_check
      _
    $region19: #{tpu_custom_call.1} parent=1 // pred_check_branch
      %43 = sbr.rel (0) target = $region21
    $region20: #{tpu_custom_call.1} parent=1 // pred_region
      _
    $region21: #{tpu_custom_call.1} parent=1 // pred_fallthru
      _
    // Predicated region
    $region22: #{tpu_custom_call.1} parent=1 // pred_check
      _
    $region23: #{tpu_custom_call.1} parent=1 // pred_check_branch
      %45 = sbr.rel (0) target = $region25
    $region24: #{tpu_custom_call.1} parent=1 // pred_region
      _
    $region25: #{tpu_custom_call.1} parent=1 // pred_fallthru
      _
    // Predicated region
    $region26: #{tpu_custom_call.1} parent=1 // pred_check
      _
    $region27: #{tpu_custom_call.1} parent=1 // pred_check_branch
      %47 = sbr.rel (0) target = $region29
    $region28: #{tpu_custom_call.1} parent=1 // pred_region
      %48 = dma.done [#allocation3], 256
    $region29: #{tpu_custom_call.1} parent=1 // pred_fallthru
      _
    // Predicated region
    $region30: #{tpu_custom_call.1} parent=1 // pred_check
      _
    $region31: #{tpu_custom_call.1} parent=1 // pred_check_branch
      %50 = sbr.rel (0) target = $region33
    $region32: #{tpu_custom_call.1} parent=1 // pred_region
      %51 = dma.done [#allocation6], 256
    $region33: #{tpu_custom_call.1} parent=1 // pred_fallthru
      _
    %v52 = vld [vmem:[#allocation2] sm:$0x3]
    %v53 = vld [vmem:[#allocation2 + $0x2] sm:$0x3]
    %v54 = vld [vmem:[#allocation2 + $0x4] sm:$0x3]
    %v55 = vld [vmem:[#allocation2 + $0x6] sm:$0x3]
    %v56 = vld [vmem:[#allocation2 + $0x8] sm:$0x3]
    %v57 = vld [vmem:[#allocation2 + $0xa] sm:$0x3]
    %v58 = vld [vmem:[#allocation2 + $0xc] sm:$0x3]
    %v59 = vld [vmem:[#allocation2 + $0xe] sm:$0x3]
    %v60 = vld [vmem:[#allocation5] sm:$0xff]
    %v61 = vld [vmem:[#allocation5 + $0x8] sm:$0xff]
    %v62 = vld [vmem:[%s3] sm:$0x1]
    %v64 = vlaneseq
    %v65 = vshrl.u32 %v64, 7
    %v66 = vsub.s32 0, %v65
    %v67 = vrot.slane %v62, %v66
    %v77 = vcombine.low %v52, %v53
    %v78 = vcombine.low %v54, %v55
    %v80 = vunpack.c.l.s4 1983009808
    %v81 = vunpack.c.0.s8 %v80
    %v82 = vlaneseq
    %v83 = vshrl.u32 %v82, 7
    %v84 = vsub.s32 %v81, %v83
    %v85 = vrot.slane %v77, %v84
    %v87 = vunpack.c.l.s4 1983009808
    %v88 = vunpack.c.0.s8 %v87
    %v89 = vlaneseq
    %v90 = vshrl.u32 %v89, 7
    %v91 = vsub.s32 %v88, %v90
    %v92 = vrot.slane %v78, %v91
    %v93 = vcombine.low %v85, %v92
    %v94 = vcombine.low %v56, %v57
    %v95 = vcombine.low %v58, %v59
    %v97 = vunpack.c.l.s4 1983009808
    %v98 = vunpack.c.0.s8 %v97
    %v99 = vlaneseq
    %v100 = vshrl.u32 %v99, 7
    %v101 = vsub.s32 %v98, %v100
    %v102 = vrot.slane %v94, %v101
    %v104 = vunpack.c.l.s4 1983009808
    %v105 = vunpack.c.0.s8 %v104
    %v106 = vlaneseq
    %v107 = vshrl.u32 %v106, 7
    %v108 = vsub.s32 %v105, %v107
    %v109 = vrot.slane %v95, %v108
    %v110 = vcombine.low %v102, %v109
    %vm111 = vcmask 130048
    %v112 = vsel %vm111, %v93, 0
    %v114 = vsel %vm111, %v110, 0
    %116 = vmatprep.subr.mxu0 0.0
    %117 = vmatpush1.msra.mxu0 0.0
    %118 = vmatprep.subr.mxu0 0.0
    %119 = vmatpush1.msra.mxu0 0.0
    %120 = vmatprep.subr.mxu0 0.0
    %121 = vmatpush1.msra.mxu0 0.0
    %122 = vmatprep.subr.mxu0 0.0
    %123 = vmatpush1.msra.mxu0 0.0
    %124 = vmatprep.subr.mxu0 0.0
    %125 = vmatpush1.msra.mxu0 0.0
    %126 = vmatprep.subr.mxu0 0.0
    %127 = vmatpush1.msra.mxu0 0.0
    %128 = vmatprep.subr.mxu0 0.0
    %129 = vmatpush1.msra.mxu0 0.0
    %130 = vmatprep.subr.mxu0 0.0
    %131 = vmatpush1.msra.mxu0 0.0
    %132 = vmatprep.subr.mxu0 0.0
    %133 = vmatpush1.msra.mxu0 0.0
    %134 = vmatprep.subr.mxu0 0.0
    %135 = vmatpush1.msra.mxu0 0.0
    %136 = vmatprep.subr.mxu0 0.0
    %137 = vmatpush1.msra.mxu0 0.0
    %138 = vmatprep.subr.mxu0 0.0
    %139 = vmatpush1.msra.mxu0 0.0
    %140 = vmatprep.subr.mxu0 0.0
    %141 = vmatpush1.msra.mxu0 0.0
    %142 = vmatprep.subr.mxu0 0.0
    %143 = vmatpush1.msra.mxu0 0.0
    %144 = vmatprep.subr.mxu0 0.0
    %145 = vmatpush1.msra.mxu0 %v61
    %146 = vmatprep.subr.mxu0 0.0
    %147 = vmatpush1.msra.mxu0 %v60
    %148 = vmatprep.subr.mxu0 0.0
    %149 = vmatpush2.msra.mxu0 0.0
    %150 = vmatprep.subr.mxu0 0.0
    %151 = vmatpush2.msra.mxu0 0.0
    %152 = vmatprep.subr.mxu0 0.0
    %153 = vmatpush2.msra.mxu0 0.0
    %154 = vmatprep.subr.mxu0 0.0
    %155 = vmatpush2.msra.mxu0 0.0
    %156 = vmatprep.subr.mxu0 0.0
    %157 = vmatpush2.msra.mxu0 0.0
    %158 = vmatprep.subr.mxu0 0.0
    %159 = vmatpush2.msra.mxu0 0.0
    %160 = vmatprep.subr.mxu0 0.0
    %161 = vmatpush2.msra.mxu0 0.0
    %162 = vmatprep.subr.mxu0 0.0
    %163 = vmatpush2.msra.mxu0 0.0
    %164 = vmatprep.subr.mxu0 0.0
    %165 = vmatpush2.msra.mxu0 0.0
    %166 = vmatprep.subr.mxu0 0.0
    %167 = vmatpush2.msra.mxu0 0.0
    %168 = vmatprep.subr.mxu0 0.0
    %169 = vmatpush2.msra.mxu0 0.0
    %170 = vmatprep.subr.mxu0 0.0
    %171 = vmatpush2.msra.mxu0 0.0
    %172 = vmatprep.subr.mxu0 0.0
    %173 = vmatpush2.msra.mxu0 0.0
    %174 = vmatprep.subr.mxu0 0.0
    %175 = vmatpush2.msra.mxu0 0.0
    %176 = vmatprep.subr.mxu0 0.0
    %177 = vmatpush2.msra.mxu0 0.0
    %178 = vmatprep.subr.mxu0 0.0
    %179 = vmatpush2.msra.mxu0 0.0
    %180 = vmatprep.mubr.f32.mxu0 0.0
    %181 = vmatmul.mubr.f32.gmra.mxu0 %v112
    %v182 = vpop.f32.mrf.mxu0
    %v183 = vadd.f32 %v67, %v182
    %v184 = vpop.f32.mrf.mxu0
    %185 = vmatprep.mubr.f32.mxu0 0.0
    %186 = vmatmul.mubr.f32.gmra.mxu0 %v114
    %v187 = vpop.f32.mrf.mxu0
    %v188 = vadd.f32 %v67, %v187
    %v189 = vpop.f32.mrf.mxu0
    %190 = vdwg.mxu0
    %v193 = vcombine.high %v183, %v183
    %v195 = vunpack.c.l.s4 1983009808
    %v196 = vunpack.c.0.s8 %v195
    %v197 = vlaneseq
    %v198 = vshrl.u32 %v197, 7
    %v199 = vsub.s32 %v196, %v198
    %v200 = vrot.slane %v183, %v199
    %v202 = vunpack.c.l.s4 1983009808
    %v203 = vunpack.c.0.s8 %v202
    %v204 = vlaneseq
    %v205 = vshrl.u32 %v204, 7
    %v206 = vsub.s32 %v203, %v205
    %v207 = vrot.slane %v193, %v206
    %v208 = vcombine.high %v200, %v200
    %v209 = vcombine.high %v207, %v207
    %v210 = vcombine.high %v188, %v188
    %v212 = vunpack.c.l.s4 1983009808
    %v213 = vunpack.c.0.s8 %v212
    %v214 = vlaneseq
    %v215 = vshrl.u32 %v214, 7
    %v216 = vsub.s32 %v213, %v215
    %v217 = vrot.slane %v188, %v216
    %v219 = vunpack.c.l.s4 1983009808
    %v220 = vunpack.c.0.s8 %v219
    %v221 = vlaneseq
    %v222 = vshrl.u32 %v221, 7
    %v223 = vsub.s32 %v220, %v222
    %v224 = vrot.slane %v210, %v223
    %v225 = vcombine.high %v217, %v217
    %v226 = vcombine.high %v224, %v224
    %v235 = vld [vmem:[%s2] sm:$0xff]
    %v236 = vld [vmem:[%s2 + $0x8] sm:$0xff]
    %v237 = vld [vmem:[%s2 + $0x10] sm:$0xff]
    %v238 = vld [vmem:[%s2 + $0x18] sm:$0xff]
    %vm239 = vcmask 261120
    %v241 = vsel %vm239, 0.0, 0
    %243 = vmatprep.subr.mxu0 0.0
    %244 = vmatpush1.msra.mxu0 0.0
    %245 = vmatprep.subr.mxu0 0.0
    %246 = vmatpush1.msra.mxu0 0.0
    %247 = vmatprep.subr.mxu0 0.0
    %248 = vmatpush1.msra.mxu0 0.0
    %249 = vmatprep.subr.mxu0 0.0
    %250 = vmatpush1.msra.mxu0 0.0
    %251 = vmatprep.subr.mxu0 0.0
    %252 = vmatpush1.msra.mxu0 0.0
    %253 = vmatprep.subr.mxu0 0.0
    %254 = vmatpush1.msra.mxu0 0.0
    %255 = vmatprep.subr.mxu0 0.0
    %256 = vmatpush1.msra.mxu0 0.0
    %257 = vmatprep.subr.mxu0 0.0
    %258 = vmatpush1.msra.mxu0 0.0
    %259 = vmatprep.subr.mxu0 0.0
    %260 = vmatpush1.msra.mxu0 0.0
    %261 = vmatprep.subr.mxu0 0.0
    %262 = vmatpush1.msra.mxu0 0.0
    %263 = vmatprep.subr.mxu0 0.0
    %264 = vmatpush1.msra.mxu0 0.0
    %265 = vmatprep.subr.mxu0 0.0
    %266 = vmatpush1.msra.mxu0 0.0
    %267 = vmatprep.subr.mxu0 0.0
    %268 = vmatpush1.msra.mxu0 %v238
    %269 = vmatprep.subr.mxu0 0.0
    %270 = vmatpush1.msra.mxu0 %v237
    %271 = vmatprep.subr.mxu0 0.0
    %272 = vmatpush1.msra.mxu0 %v236
    %273 = vmatprep.subr.mxu0 0.0
    %274 = vmatpush1.msra.mxu0 %v235
    %275 = vmatprep.subr.mxu0 0.0
    %276 = vmatpush2.msra.mxu0 0.0
    %277 = vmatprep.subr.mxu0 0.0
    %278 = vmatpush2.msra.mxu0 0.0
    %279 = vmatprep.subr.mxu0 0.0
    %280 = vmatpush2.msra.mxu0 0.0
    %281 = vmatprep.subr.mxu0 0.0
    %282 = vmatpush2.msra.mxu0 0.0
    %283 = vmatprep.subr.mxu0 0.0
    %284 = vmatpush2.msra.mxu0 0.0
    %285 = vmatprep.subr.mxu0 0.0
    %286 = vmatpush2.msra.mxu0 0.0
    %287 = vmatprep.subr.mxu0 0.0
    %288 = vmatpush2.msra.mxu0 0.0
    %289 = vmatprep.subr.mxu0 0.0
    %290 = vmatpush2.msra.mxu0 0.0
    %291 = vmatprep.subr.mxu0 0.0
    %292 = vmatpush2.msra.mxu0 0.0
    %293 = vmatprep.subr.mxu0 0.0
    %294 = vmatpush2.msra.mxu0 0.0
    %295 = vmatprep.subr.mxu0 0.0
    %296 = vmatpush2.msra.mxu0 0.0
    %297 = vmatprep.subr.mxu0 0.0
    %298 = vmatpush2.msra.mxu0 0.0
    %299 = vmatprep.subr.mxu0 0.0
    %300 = vmatpush2.msra.mxu0 0.0
    %301 = vmatprep.subr.mxu0 0.0
    %302 = vmatpush2.msra.mxu0 0.0
    %303 = vmatprep.subr.mxu0 0.0
    %304 = vmatpush2.msra.mxu0 0.0
    %305 = vmatprep.subr.mxu0 0.0
    %306 = vmatpush2.msra.mxu0 0.0
    %307 = vmatprep.mubr.f32.mxu0 0.0
    %308 = vmatmul.mubr.f32.gmra.mxu0 %v241
    %v309 = vpop.f32.mrf.mxu0
    %v310 = vadd.f32 0.0, %v309
    %v311 = vpop.f32.mrf.mxu0
    %312 = vdwg.mxu0
    %v313 = vadd.f32 %v200, %v310
    %v314 = vxor.u32 %v313, 2147483648
    %v315 = vmul.f32 %v314, 1.442695
    %v316 = vpow.pop %v315
    %v317 = vadd.f32 %v316, 1.0
    %v318 = vrcp.pop %v317
    %v319 = vmul.f32 1.0, %v318
    %v320 = vtanh.pop %v313
    %v321 = vmul.f32 %v319, 0.0
    %323 = vrot.lane.b32.xlu0 %v320, 64
    %v324 = vpop.permute.xlu0 %323
    %v326 = vmul.f32 %v319, %v324
    %328 = vrot.lane.b32.xlu0 %v326, 32
    %v329 = vpop.permute.xlu0 %328
    %v331 = vadd.f32 %v321, %v329
    %v332 = vtanh.pop %v331
    %334 = vrot.lane.b32.xlu0 %v332, 64
    %v335 = vpop.permute.xlu0 %334
    %v337 = vmul.f32 %v319, %v335
    %v340 = vunpack.c.l.s4 1983009808
    %v341 = vunpack.c.0.s8 %v340
    %v342 = vlaneseq
    %v343 = vshrl.u32 %v342, 7
    %v344 = vsub.s32 %v341, %v343
    %v345 = vrot.slane %v337, %v344
    %346 = vrot.lane.b32.xlu0 %v345, 32
    %v347 = vpop.permute.xlu0 %346
    %v348 = vsel %vm239, %v347, 0
    %350 = vmatprep.subr.mxu0 0.0
    %351 = vmatpush1.msra.mxu0 0.0
    %352 = vmatprep.subr.mxu0 0.0
    %353 = vmatpush1.msra.mxu0 0.0
    %354 = vmatprep.subr.mxu0 0.0
    %355 = vmatpush1.msra.mxu0 0.0
    %356 = vmatprep.subr.mxu0 0.0
    %357 = vmatpush1.msra.mxu0 0.0
    %358 = vmatprep.subr.mxu0 0.0
    %359 = vmatpush1.msra.mxu0 0.0
    %360 = vmatprep.subr.mxu0 0.0
    %361 = vmatpush1.msra.mxu0 0.0
    %362 = vmatprep.subr.mxu0 0.0
    %363 = vmatpush1.msra.mxu0 0.0
    %364 = vmatprep.subr.mxu0 0.0
    %365 = vmatpush1.msra.mxu0 0.0
    %366 = vmatprep.subr.mxu0 0.0
    %367 = vmatpush1.msra.mxu0 0.0
    %368 = vmatprep.subr.mxu0 0.0
    %369 = vmatpush1.msra.mxu0 0.0
    %370 = vmatprep.subr.mxu0 0.0
    %371 = vmatpush1.msra.mxu0 0.0
    %372 = vmatprep.subr.mxu0 0.0
    %373 = vmatpush1.msra.mxu0 0.0
    %374 = vmatprep.subr.mxu0 0.0
    %375 = vmatpush1.msra.mxu0 %v238
    %376 = vmatprep.subr.mxu0 0.0
    %377 = vmatpush1.msra.mxu0 %v237
    %378 = vmatprep.subr.mxu0 0.0
    %379 = vmatpush1.msra.mxu0 %v236
    %380 = vmatprep.subr.mxu0 0.0
    %381 = vmatpush1.msra.mxu0 %v235
    %382 = vmatprep.subr.mxu0 0.0
    %383 = vmatpush2.msra.mxu0 0.0
    %384 = vmatprep.subr.mxu0 0.0
    %385 = vmatpush2.msra.mxu0 0.0
    %386 = vmatprep.subr.mxu0 0.0
    %387 = vmatpush2.msra.mxu0 0.0
    %388 = vmatprep.subr.mxu0 0.0
    %389 = vmatpush2.msra.mxu0 0.0
    %390 = vmatprep.subr.mxu0 0.0
    %391 = vmatpush2.msra.mxu0 0.0
    %392 = vmatprep.subr.mxu0 0.0
    %393 = vmatpush2.msra.mxu0 0.0
    %394 = vmatprep.subr.mxu0 0.0
    %395 = vmatpush2.msra.mxu0 0.0
    %396 = vmatprep.subr.mxu0 0.0
    %397 = vmatpush2.msra.mxu0 0.0
    %398 = vmatprep.subr.mxu0 0.0
    %399 = vmatpush2.msra.mxu0 0.0
    %400 = vmatprep.subr.mxu0 0.0
    %401 = vmatpush2.msra.mxu0 0.0
    %402 = vmatprep.subr.mxu0 0.0
    %403 = vmatpush2.msra.mxu0 0.0
    %404 = vmatprep.subr.mxu0 0.0
    %405 = vmatpush2.msra.mxu0 0.0
    %406 = vmatprep.subr.mxu0 0.0
    %407 = vmatpush2.msra.mxu0 0.0
    %408 = vmatprep.subr.mxu0 0.0
    %409 = vmatpush2.msra.mxu0 0.0
    %410 = vmatprep.subr.mxu0 0.0
    %411 = vmatpush2.msra.mxu0 0.0
    %412 = vmatprep.subr.mxu0 0.0
    %413 = vmatpush2.msra.mxu0 0.0
    %414 = vmatprep.mubr.f32.mxu0 0.0
    %415 = vmatmul.mubr.f32.gmra.mxu0 %v348
    %v416 = vpop.f32.mrf.mxu0
    %v417 = vadd.f32 0.0, %v416
    %v418 = vpop.f32.mrf.mxu0
    %419 = vdwg.mxu0
    %v420 = vadd.f32 %v208, %v417
    %v421 = vxor.u32 %v420, 2147483648
    %v422 = vmul.f32 %v421, 1.442695
    %v423 = vpow.pop %v422
    %v424 = vadd.f32 %v423, 1.0
    %v425 = vrcp.pop %v424
    %v426 = vmul.f32 1.0, %v425
    %v427 = vtanh.pop %v420
    %v428 = vmul.f32 %v426, %v331
    %430 = vrot.lane.b32.xlu0 %v427, 64
    %v431 = vpop.permute.xlu0 %430
    %v433 = vmul.f32 %v426, %v431
    %435 = vrot.lane.b32.xlu0 %v433, 32
    %v436 = vpop.permute.xlu0 %435
    %v438 = vadd.f32 %v428, %v436
    %v439 = vtanh.pop %v438
    %441 = vrot.lane.b32.xlu0 %v439, 64
    %v442 = vpop.permute.xlu0 %441
    %v444 = vmul.f32 %v426, %v442
    %v447 = vunpack.c.l.s4 1983009808
    %v448 = vunpack.c.0.s8 %v447
    %v449 = vlaneseq
    %v450 = vshrl.u32 %v449, 7
    %v451 = vsub.s32 %v448, %v450
    %v452 = vrot.slane %v444, %v451
    %453 = vrot.lane.b32.xlu0 %v452, 32
    %v454 = vpop.permute.xlu0 %453
    %v455 = vsel %vm239, %v454, 0
    %457 = vmatprep.subr.mxu0 0.0
    %458 = vmatpush1.msra.mxu0 0.0
    %459 = vmatprep.subr.mxu0 0.0
    %460 = vmatpush1.msra.mxu0 0.0
    %461 = vmatprep.subr.mxu0 0.0
    %462 = vmatpush1.msra.mxu0 0.0
    %463 = vmatprep.subr.mxu0 0.0
    %464 = vmatpush1.msra.mxu0 0.0
    %465 = vmatprep.subr.mxu0 0.0
    %466 = vmatpush1.msra.mxu0 0.0
    %467 = vmatprep.subr.mxu0 0.0
    %468 = vmatpush1.msra.mxu0 0.0
    %469 = vmatprep.subr.mxu0 0.0
    %470 = vmatpush1.msra.mxu0 0.0
    %471 = vmatprep.subr.mxu0 0.0
    %472 = vmatpush1.msra.mxu0 0.0
    %473 = vmatprep.subr.mxu0 0.0
    %474 = vmatpush1.msra.mxu0 0.0
    %475 = vmatprep.subr.mxu0 0.0
    %476 = vmatpush1.msra.mxu0 0.0
    %477 = vmatprep.subr.mxu0 0.0
    %478 = vmatpush1.msra.mxu0 0.0
    %479 = vmatprep.subr.mxu0 0.0
    %480 = vmatpush1.msra.mxu0 0.0
    %481 = vmatprep.subr.mxu0 0.0
    %482 = vmatpush1.msra.mxu0 %v238
    %483 = vmatprep.subr.mxu0 0.0
    %484 = vmatpush1.msra.mxu0 %v237
    %485 = vmatprep.subr.mxu0 0.0
    %486 = vmatpush1.msra.mxu0 %v236
    %487 = vmatprep.subr.mxu0 0.0
    %488 = vmatpush1.msra.mxu0 %v235
    %489 = vmatprep.subr.mxu0 0.0
    %490 = vmatpush2.msra.mxu0 0.0
    %491 = vmatprep.subr.mxu0 0.0
    %492 = vmatpush2.msra.mxu0 0.0
    %493 = vmatprep.subr.mxu0 0.0
    %494 = vmatpush2.msra.mxu0 0.0
    %495 = vmatprep.subr.mxu0 0.0
    %496 = vmatpush2.msra.mxu0 0.0
    %497 = vmatprep.subr.mxu0 0.0
    %498 = vmatpush2.msra.mxu0 0.0
    %499 = vmatprep.subr.mxu0 0.0
    %500 = vmatpush2.msra.mxu0 0.0
    %501 = vmatprep.subr.mxu0 0.0
    %502 = vmatpush2.msra.mxu0 0.0
    %503 = vmatprep.subr.mxu0 0.0
    %504 = vmatpush2.msra.mxu0 0.0
    %505 = vmatprep.subr.mxu0 0.0
    %506 = vmatpush2.msra.mxu0 0.0
    %507 = vmatprep.subr.mxu0 0.0
    %508 = vmatpush2.msra.mxu0 0.0
    %509 = vmatprep.subr.mxu0 0.0
    %510 = vmatpush2.msra.mxu0 0.0
    %511 = vmatprep.subr.mxu0 0.0
    %512 = vmatpush2.msra.mxu0 0.0
    %513 = vmatprep.subr.mxu0 0.0
    %514 = vmatpush2.msra.mxu0 0.0
    %515 = vmatprep.subr.mxu0 0.0
    %516 = vmatpush2.msra.mxu0 0.0
    %517 = vmatprep.subr.mxu0 0.0
    %518 = vmatpush2.msra.mxu0 0.0
    %519 = vmatprep.subr.mxu0 0.0
    %520 = vmatpush2.msra.mxu0 0.0
    %521 = vmatprep.mubr.f32.mxu0 0.0
    %522 = vmatmul.mubr.f32.gmra.mxu0 %v455
    %v523 = vpop.f32.mrf.mxu0
    %v524 = vadd.f32 0.0, %v523
    %v525 = vpop.f32.mrf.mxu0
    %526 = vdwg.mxu0
    %v527 = vadd.f32 %v207, %v524
    %v528 = vxor.u32 %v527, 2147483648
    %v529 = vmul.f32 %v528, 1.442695
    %v530 = vpow.pop %v529
    %v531 = vadd.f32 %v530, 1.0
    %v532 = vrcp.pop %v531
    %v533 = vmul.f32 1.0, %v532
    %v534 = vtanh.pop %v527
    %v535 = vmul.f32 %v533, %v438
    %537 = vrot.lane.b32.xlu0 %v534, 64
    %v538 = vpop.permute.xlu0 %537
    %v540 = vmul.f32 %v533, %v538
    %542 = vrot.lane.b32.xlu0 %v540, 32
    %v543 = vpop.permute.xlu0 %542
    %v545 = vadd.f32 %v535, %v543
    %v546 = vtanh.pop %v545
    %548 = vrot.lane.b32.xlu0 %v546, 64
    %v549 = vpop.permute.xlu0 %548
    %v551 = vmul.f32 %v533, %v549
    %v554 = vunpack.c.l.s4 1983009808
    %v555 = vunpack.c.0.s8 %v554
    %v556 = vlaneseq
    %v557 = vshrl.u32 %v556, 7
    %v558 = vsub.s32 %v555, %v557
    %v559 = vrot.slane %v551, %v558
    %560 = vrot.lane.b32.xlu0 %v559, 32
    %v561 = vpop.permute.xlu0 %560
    %v562 = vsel %vm239, %v561, 0
    %564 = vmatprep.subr.mxu0 0.0
    %565 = vmatpush1.msra.mxu0 0.0
    %566 = vmatprep.subr.mxu0 0.0
    %567 = vmatpush1.msra.mxu0 0.0
    %568 = vmatprep.subr.mxu0 0.0
    %569 = vmatpush1.msra.mxu0 0.0
    %570 = vmatprep.subr.mxu0 0.0
    %571 = vmatpush1.msra.mxu0 0.0
    %572 = vmatprep.subr.mxu0 0.0
    %573 = vmatpush1.msra.mxu0 0.0
    %574 = vmatprep.subr.mxu0 0.0
    %575 = vmatpush1.msra.mxu0 0.0
    %576 = vmatprep.subr.mxu0 0.0
    %577 = vmatpush1.msra.mxu0 0.0
    %578 = vmatprep.subr.mxu0 0.0
    %579 = vmatpush1.msra.mxu0 0.0
    %580 = vmatprep.subr.mxu0 0.0
    %581 = vmatpush1.msra.mxu0 0.0
    %582 = vmatprep.subr.mxu0 0.0
    %583 = vmatpush1.msra.mxu0 0.0
    %584 = vmatprep.subr.mxu0 0.0
    %585 = vmatpush1.msra.mxu0 0.0
    %586 = vmatprep.subr.mxu0 0.0
    %587 = vmatpush1.msra.mxu0 0.0
    %588 = vmatprep.subr.mxu0 0.0
    %589 = vmatpush1.msra.mxu0 %v238
    %590 = vmatprep.subr.mxu0 0.0
    %591 = vmatpush1.msra.mxu0 %v237
    %592 = vmatprep.subr.mxu0 0.0
    %593 = vmatpush1.msra.mxu0 %v236
    %594 = vmatprep.subr.mxu0 0.0
    %595 = vmatpush1.msra.mxu0 %v235
    %596 = vmatprep.subr.mxu0 0.0
    %597 = vmatpush2.msra.mxu0 0.0
    %598 = vmatprep.subr.mxu0 0.0
    %599 = vmatpush2.msra.mxu0 0.0
    %600 = vmatprep.subr.mxu0 0.0
    %601 = vmatpush2.msra.mxu0 0.0
    %602 = vmatprep.subr.mxu0 0.0
    %603 = vmatpush2.msra.mxu0 0.0
    %604 = vmatprep.subr.mxu0 0.0
    %605 = vmatpush2.msra.mxu0 0.0
    %606 = vmatprep.subr.mxu0 0.0
    %607 = vmatpush2.msra.mxu0 0.0
    %608 = vmatprep.subr.mxu0 0.0
    %609 = vmatpush2.msra.mxu0 0.0
    %610 = vmatprep.subr.mxu0 0.0
    %611 = vmatpush2.msra.mxu0 0.0
    %612 = vmatprep.subr.mxu0 0.0
    %613 = vmatpush2.msra.mxu0 0.0
    %614 = vmatprep.subr.mxu0 0.0
    %615 = vmatpush2.msra.mxu0 0.0
    %616 = vmatprep.subr.mxu0 0.0
    %617 = vmatpush2.msra.mxu0 0.0
    %618 = vmatprep.subr.mxu0 0.0
    %619 = vmatpush2.msra.mxu0 0.0
    %620 = vmatprep.subr.mxu0 0.0
    %621 = vmatpush2.msra.mxu0 0.0
    %622 = vmatprep.subr.mxu0 0.0
    %623 = vmatpush2.msra.mxu0 0.0
    %624 = vmatprep.subr.mxu0 0.0
    %625 = vmatpush2.msra.mxu0 0.0
    %626 = vmatprep.subr.mxu0 0.0
    %627 = vmatpush2.msra.mxu0 0.0
    %628 = vmatprep.mubr.f32.mxu0 0.0
    %629 = vmatmul.mubr.f32.gmra.mxu0 %v562
    %v630 = vpop.f32.mrf.mxu0
    %v631 = vadd.f32 0.0, %v630
    %v632 = vpop.f32.mrf.mxu0
    %633 = vdwg.mxu0
    %v634 = vadd.f32 %v209, %v631
    %v635 = vxor.u32 %v634, 2147483648
    %v636 = vmul.f32 %v635, 1.442695
    %v637 = vpow.pop %v636
    %v638 = vadd.f32 %v637, 1.0
    %v639 = vrcp.pop %v638
    %v640 = vmul.f32 1.0, %v639
    %v641 = vtanh.pop %v634
    %v642 = vmul.f32 %v640, %v545
    %644 = vrot.lane.b32.xlu0 %v641, 64
    %v645 = vpop.permute.xlu0 %644
    %v647 = vmul.f32 %v640, %v645
    %649 = vrot.lane.b32.xlu0 %v647, 32
    %v650 = vpop.permute.xlu0 %649
    %v652 = vadd.f32 %v642, %v650
    %v653 = vtanh.pop %v652
    %655 = vrot.lane.b32.xlu0 %v653, 64
    %v656 = vpop.permute.xlu0 %655
    %v658 = vmul.f32 %v640, %v656
    %v661 = vunpack.c.l.s4 1983009808
    %v662 = vunpack.c.0.s8 %v661
    %v663 = vlaneseq
    %v664 = vshrl.u32 %v663, 7
    %v665 = vsub.s32 %v662, %v664
    %v666 = vrot.slane %v658, %v665
    %667 = vrot.lane.b32.xlu0 %v666, 32
    %v668 = vpop.permute.xlu0 %667
    %v669 = vsel %vm239, %v668, 0
    %671 = vmatprep.subr.mxu0 0.0
    %672 = vmatpush1.msra.mxu0 0.0
    %673 = vmatprep.subr.mxu0 0.0
    %674 = vmatpush1.msra.mxu0 0.0
    %675 = vmatprep.subr.mxu0 0.0
    %676 = vmatpush1.msra.mxu0 0.0
    %677 = vmatprep.subr.mxu0 0.0
    %678 = vmatpush1.msra.mxu0 0.0
    %679 = vmatprep.subr.mxu0 0.0
    %680 = vmatpush1.msra.mxu0 0.0
    %681 = vmatprep.subr.mxu0 0.0
    %682 = vmatpush1.msra.mxu0 0.0
    %683 = vmatprep.subr.mxu0 0.0
    %684 = vmatpush1.msra.mxu0 0.0
    %685 = vmatprep.subr.mxu0 0.0
    %686 = vmatpush1.msra.mxu0 0.0
    %687 = vmatprep.subr.mxu0 0.0
    %688 = vmatpush1.msra.mxu0 0.0
    %689 = vmatprep.subr.mxu0 0.0
    %690 = vmatpush1.msra.mxu0 0.0
    %691 = vmatprep.subr.mxu0 0.0
    %692 = vmatpush1.msra.mxu0 0.0
    %693 = vmatprep.subr.mxu0 0.0
    %694 = vmatpush1.msra.mxu0 0.0
    %695 = vmatprep.subr.mxu0 0.0
    %696 = vmatpush1.msra.mxu0 %v238
    %697 = vmatprep.subr.mxu0 0.0
    %698 = vmatpush1.msra.mxu0 %v237
    %699 = vmatprep.subr.mxu0 0.0
    %700 = vmatpush1.msra.mxu0 %v236
    %701 = vmatprep.subr.mxu0 0.0
    %702 = vmatpush1.msra.mxu0 %v235
    %703 = vmatprep.subr.mxu0 0.0
    %704 = vmatpush2.msra.mxu0 0.0
    %705 = vmatprep.subr.mxu0 0.0
    %706 = vmatpush2.msra.mxu0 0.0
    %707 = vmatprep.subr.mxu0 0.0
    %708 = vmatpush2.msra.mxu0 0.0
    %709 = vmatprep.subr.mxu0 0.0
    %710 = vmatpush2.msra.mxu0 0.0
    %711 = vmatprep.subr.mxu0 0.0
    %712 = vmatpush2.msra.mxu0 0.0
    %713 = vmatprep.subr.mxu0 0.0
    %714 = vmatpush2.msra.mxu0 0.0
    %715 = vmatprep.subr.mxu0 0.0
    %716 = vmatpush2.msra.mxu0 0.0
    %717 = vmatprep.subr.mxu0 0.0
    %718 = vmatpush2.msra.mxu0 0.0
    %719 = vmatprep.subr.mxu0 0.0
    %720 = vmatpush2.msra.mxu0 0.0
    %721 = vmatprep.subr.mxu0 0.0
    %722 = vmatpush2.msra.mxu0 0.0
    %723 = vmatprep.subr.mxu0 0.0
    %724 = vmatpush2.msra.mxu0 0.0
    %725 = vmatprep.subr.mxu0 0.0
    %726 = vmatpush2.msra.mxu0 0.0
    %727 = vmatprep.subr.mxu0 0.0
    %728 = vmatpush2.msra.mxu0 0.0
    %729 = vmatprep.subr.mxu0 0.0
    %730 = vmatpush2.msra.mxu0 0.0
    %731 = vmatprep.subr.mxu0 0.0
    %732 = vmatpush2.msra.mxu0 0.0
    %733 = vmatprep.subr.mxu0 0.0
    %734 = vmatpush2.msra.mxu0 0.0
    %735 = vmatprep.mubr.f32.mxu0 0.0
    %736 = vmatmul.mubr.f32.gmra.mxu0 %v669
    %v737 = vpop.f32.mrf.mxu0
    %v738 = vadd.f32 0.0, %v737
    %v739 = vpop.f32.mrf.mxu0
    %740 = vdwg.mxu0
    %v741 = vadd.f32 %v217, %v738
    %v742 = vxor.u32 %v741, 2147483648
    %v743 = vmul.f32 %v742, 1.442695
    %v744 = vpow.pop %v743
    %v745 = vadd.f32 %v744, 1.0
    %v746 = vrcp.pop %v745
    %v747 = vmul.f32 1.0, %v746
    %v748 = vtanh.pop %v741
    %v749 = vmul.f32 %v747, %v652
    %751 = vrot.lane.b32.xlu0 %v748, 64
    %v752 = vpop.permute.xlu0 %751
    %v754 = vmul.f32 %v747, %v752
    %756 = vrot.lane.b32.xlu0 %v754, 32
    %v757 = vpop.permute.xlu0 %756
    %v759 = vadd.f32 %v749, %v757
    %v760 = vtanh.pop %v759
    %762 = vrot.lane.b32.xlu0 %v760, 64
    %v763 = vpop.permute.xlu0 %762
    %v765 = vmul.f32 %v747, %v763
    %v768 = vunpack.c.l.s4 1983009808
    %v769 = vunpack.c.0.s8 %v768
    %v770 = vlaneseq
    %v771 = vshrl.u32 %v770, 7
    %v772 = vsub.s32 %v769, %v771
    %v773 = vrot.slane %v765, %v772
    %774 = vrot.lane.b32.xlu0 %v773, 32
    %v775 = vpop.permute.xlu0 %774
    %v776 = vsel %vm239, %v775, 0
    %778 = vmatprep.subr.mxu0 0.0
    %779 = vmatpush1.msra.mxu0 0.0
    %780 = vmatprep.subr.mxu0 0.0
    %781 = vmatpush1.msra.mxu0 0.0
    %782 = vmatprep.subr.mxu0 0.0
    %783 = vmatpush1.msra.mxu0 0.0
    %784 = vmatprep.subr.mxu0 0.0
    %785 = vmatpush1.msra.mxu0 0.0
    %786 = vmatprep.subr.mxu0 0.0
    %787 = vmatpush1.msra.mxu0 0.0
    %788 = vmatprep.subr.mxu0 0.0
    %789 = vmatpush1.msra.mxu0 0.0
    %790 = vmatprep.subr.mxu0 0.0
    %791 = vmatpush1.msra.mxu0 0.0
    %792 = vmatprep.subr.mxu0 0.0
    %793 = vmatpush1.msra.mxu0 0.0
    %794 = vmatprep.subr.mxu0 0.0
    %795 = vmatpush1.msra.mxu0 0.0
    %796 = vmatprep.subr.mxu0 0.0
    %797 = vmatpush1.msra.mxu0 0.0
    %798 = vmatprep.subr.mxu0 0.0
    %799 = vmatpush1.msra.mxu0 0.0
    %800 = vmatprep.subr.mxu0 0.0
    %801 = vmatpush1.msra.mxu0 0.0
    %802 = vmatprep.subr.mxu0 0.0
    %803 = vmatpush1.msra.mxu0 %v238
    %804 = vmatprep.subr.mxu0 0.0
    %805 = vmatpush1.msra.mxu0 %v237
    %806 = vmatprep.subr.mxu0 0.0
    %807 = vmatpush1.msra.mxu0 %v236
    %808 = vmatprep.subr.mxu0 0.0
    %809 = vmatpush1.msra.mxu0 %v235
    %810 = vmatprep.subr.mxu0 0.0
    %811 = vmatpush2.msra.mxu0 0.0
    %812 = vmatprep.subr.mxu0 0.0
    %813 = vmatpush2.msra.mxu0 0.0
    %814 = vmatprep.subr.mxu0 0.0
    %815 = vmatpush2.msra.mxu0 0.0
    %816 = vmatprep.subr.mxu0 0.0
    %817 = vmatpush2.msra.mxu0 0.0
    %818 = vmatprep.subr.mxu0 0.0
    %819 = vmatpush2.msra.mxu0 0.0
    %820 = vmatprep.subr.mxu0 0.0
    %821 = vmatpush2.msra.mxu0 0.0
    %822 = vmatprep.subr.mxu0 0.0
    %823 = vmatpush2.msra.mxu0 0.0
    %824 = vmatprep.subr.mxu0 0.0
    %825 = vmatpush2.msra.mxu0 0.0
    %826 = vmatprep.subr.mxu0 0.0
    %827 = vmatpush2.msra.mxu0 0.0
    %828 = vmatprep.subr.mxu0 0.0
    %829 = vmatpush2.msra.mxu0 0.0
    %830 = vmatprep.subr.mxu0 0.0
    %831 = vmatpush2.msra.mxu0 0.0
    %832 = vmatprep.subr.mxu0 0.0
    %833 = vmatpush2.msra.mxu0 0.0
    %834 = vmatprep.subr.mxu0 0.0
    %835 = vmatpush2.msra.mxu0 0.0
    %836 = vmatprep.subr.mxu0 0.0
    %837 = vmatpush2.msra.mxu0 0.0
    %838 = vmatprep.subr.mxu0 0.0
    %839 = vmatpush2.msra.mxu0 0.0
    %840 = vmatprep.subr.mxu0 0.0
    %841 = vmatpush2.msra.mxu0 0.0
    %842 = vmatprep.mubr.f32.mxu0 0.0
    %843 = vmatmul.mubr.f32.gmra.mxu0 %v776
    %v844 = vpop.f32.mrf.mxu0
    %v845 = vadd.f32 0.0, %v844
    %v846 = vpop.f32.mrf.mxu0
    %847 = vdwg.mxu0
    %v848 = vadd.f32 %v225, %v845
    %v849 = vxor.u32 %v848, 2147483648
    %v850 = vmul.f32 %v849, 1.442695
    %v851 = vpow.pop %v850
    %v852 = vadd.f32 %v851, 1.0
    %v853 = vrcp.pop %v852
    %v854 = vmul.f32 1.0, %v853
    %v855 = vtanh.pop %v848
    %v856 = vmul.f32 %v854, %v759
    %858 = vrot.lane.b32.xlu0 %v855, 64
    %v859 = vpop.permute.xlu0 %858
    %v861 = vmul.f32 %v854, %v859
    %863 = vrot.lane.b32.xlu0 %v861, 32
    %v864 = vpop.permute.xlu0 %863
    %v866 = vadd.f32 %v856, %v864
    %v867 = vtanh.pop %v866
    %869 = vrot.lane.b32.xlu0 %v867, 64
    %v870 = vpop.permute.xlu0 %869
    %v872 = vmul.f32 %v854, %v870
    %v875 = vunpack.c.l.s4 1983009808
    %v876 = vunpack.c.0.s8 %v875
    %v877 = vlaneseq
    %v878 = vshrl.u32 %v877, 7
    %v879 = vsub.s32 %v876, %v878
    %v880 = vrot.slane %v872, %v879
    %881 = vrot.lane.b32.xlu0 %v880, 32
    %v882 = vpop.permute.xlu0 %881
    %v883 = vsel %vm239, %v882, 0
    %885 = vmatprep.subr.mxu0 0.0
    %886 = vmatpush1.msra.mxu0 0.0
    %887 = vmatprep.subr.mxu0 0.0
    %888 = vmatpush1.msra.mxu0 0.0
    %889 = vmatprep.subr.mxu0 0.0
    %890 = vmatpush1.msra.mxu0 0.0
    %891 = vmatprep.subr.mxu0 0.0
    %892 = vmatpush1.msra.mxu0 0.0
    %893 = vmatprep.subr.mxu0 0.0
    %894 = vmatpush1.msra.mxu0 0.0
    %895 = vmatprep.subr.mxu0 0.0
    %896 = vmatpush1.msra.mxu0 0.0
    %897 = vmatprep.subr.mxu0 0.0
    %898 = vmatpush1.msra.mxu0 0.0
    %899 = vmatprep.subr.mxu0 0.0
    %900 = vmatpush1.msra.mxu0 0.0
    %901 = vmatprep.subr.mxu0 0.0
    %902 = vmatpush1.msra.mxu0 0.0
    %903 = vmatprep.subr.mxu0 0.0
    %904 = vmatpush1.msra.mxu0 0.0
    %905 = vmatprep.subr.mxu0 0.0
    %906 = vmatpush1.msra.mxu0 0.0
    %907 = vmatprep.subr.mxu0 0.0
    %908 = vmatpush1.msra.mxu0 0.0
    %909 = vmatprep.subr.mxu0 0.0
    %910 = vmatpush1.msra.mxu0 %v238
    %911 = vmatprep.subr.mxu0 0.0
    %912 = vmatpush1.msra.mxu0 %v237
    %913 = vmatprep.subr.mxu0 0.0
    %914 = vmatpush1.msra.mxu0 %v236
    %915 = vmatprep.subr.mxu0 0.0
    %916 = vmatpush1.msra.mxu0 %v235
    %917 = vmatprep.subr.mxu0 0.0
    %918 = vmatpush2.msra.mxu0 0.0
    %919 = vmatprep.subr.mxu0 0.0
    %920 = vmatpush2.msra.mxu0 0.0
    %921 = vmatprep.subr.mxu0 0.0
    %922 = vmatpush2.msra.mxu0 0.0
    %923 = vmatprep.subr.mxu0 0.0
    %924 = vmatpush2.msra.mxu0 0.0
    %925 = vmatprep.subr.mxu0 0.0
    %926 = vmatpush2.msra.mxu0 0.0
    %927 = vmatprep.subr.mxu0 0.0
    %928 = vmatpush2.msra.mxu0 0.0
    %929 = vmatprep.subr.mxu0 0.0
    %930 = vmatpush2.msra.mxu0 0.0
    %931 = vmatprep.subr.mxu0 0.0
    %932 = vmatpush2.msra.mxu0 0.0
    %933 = vmatprep.subr.mxu0 0.0
    %934 = vmatpush2.msra.mxu0 0.0
    %935 = vmatprep.subr.mxu0 0.0
    %936 = vmatpush2.msra.mxu0 0.0
    %937 = vmatprep.subr.mxu0 0.0
    %938 = vmatpush2.msra.mxu0 0.0
    %939 = vmatprep.subr.mxu0 0.0
    %940 = vmatpush2.msra.mxu0 0.0
    %941 = vmatprep.subr.mxu0 0.0
    %942 = vmatpush2.msra.mxu0 0.0
    %943 = vmatprep.subr.mxu0 0.0
    %944 = vmatpush2.msra.mxu0 0.0
    %945 = vmatprep.subr.mxu0 0.0
    %946 = vmatpush2.msra.mxu0 0.0
    %947 = vmatprep.subr.mxu0 0.0
    %948 = vmatpush2.msra.mxu0 0.0
    %949 = vmatprep.mubr.f32.mxu0 0.0
    %950 = vmatmul.mubr.f32.gmra.mxu0 %v883
    %v951 = vpop.f32.mrf.mxu0
    %v952 = vadd.f32 0.0, %v951
    %v953 = vpop.f32.mrf.mxu0
    %954 = vdwg.mxu0
    %v955 = vadd.f32 %v224, %v952
    %v956 = vxor.u32 %v955, 2147483648
    %v957 = vmul.f32 %v956, 1.442695
    %v958 = vpow.pop %v957
    %v959 = vadd.f32 %v958, 1.0
    %v960 = vrcp.pop %v959
    %v961 = vmul.f32 1.0, %v960
    %v962 = vtanh.pop %v955
    %v963 = vmul.f32 %v961, %v866
    %965 = vrot.lane.b32.xlu0 %v962, 64
    %v966 = vpop.permute.xlu0 %965
    %v968 = vmul.f32 %v961, %v966
    %970 = vrot.lane.b32.xlu0 %v968, 32
    %v971 = vpop.permute.xlu0 %970
    %v973 = vadd.f32 %v963, %v971
    %v974 = vtanh.pop %v973
    %976 = vrot.lane.b32.xlu0 %v974, 64
    %v977 = vpop.permute.xlu0 %976
    %v979 = vmul.f32 %v961, %v977
    %v982 = vunpack.c.l.s4 1983009808
    %v983 = vunpack.c.0.s8 %v982
    %v984 = vlaneseq
    %v985 = vshrl.u32 %v984, 7
    %v986 = vsub.s32 %v983, %v985
    %v987 = vrot.slane %v979, %v986
    %988 = vrot.lane.b32.xlu0 %v987, 32
    %v989 = vpop.permute.xlu0 %988
    %v990 = vsel %vm239, %v989, 0
    %992 = vmatprep.subr.mxu0 0.0
    %993 = vmatpush1.msra.mxu0 0.0
    %994 = vmatprep.subr.mxu0 0.0
    %995 = vmatpush1.msra.mxu0 0.0
    %996 = vmatprep.subr.mxu0 0.0
    %997 = vmatpush1.msra.mxu0 0.0
    %998 = vmatprep.subr.mxu0 0.0
    %999 = vmatpush1.msra.mxu0 0.0
    %1000 = vmatprep.subr.mxu0 0.0
    %1001 = vmatpush1.msra.mxu0 0.0
    %1002 = vmatprep.subr.mxu0 0.0
    %1003 = vmatpush1.msra.mxu0 0.0
    %1004 = vmatprep.subr.mxu0 0.0
    %1005 = vmatpush1.msra.mxu0 0.0
    %1006 = vmatprep.subr.mxu0 0.0
    %1007 = vmatpush1.msra.mxu0 0.0
    %1008 = vmatprep.subr.mxu0 0.0
    %1009 = vmatpush1.msra.mxu0 0.0
    %1010 = vmatprep.subr.mxu0 0.0
    %1011 = vmatpush1.msra.mxu0 0.0
    %1012 = vmatprep.subr.mxu0 0.0
    %1013 = vmatpush1.msra.mxu0 0.0
    %1014 = vmatprep.subr.mxu0 0.0
    %1015 = vmatpush1.msra.mxu0 0.0
    %1016 = vmatprep.subr.mxu0 0.0
    %1017 = vmatpush1.msra.mxu0 %v238
    %1018 = vmatprep.subr.mxu0 0.0
    %1019 = vmatpush1.msra.mxu0 %v237
    %1020 = vmatprep.subr.mxu0 0.0
    %1021 = vmatpush1.msra.mxu0 %v236
    %1022 = vmatprep.subr.mxu0 0.0
    %1023 = vmatpush1.msra.mxu0 %v235
    %1024 = vmatprep.subr.mxu0 0.0
    %1025 = vmatpush2.msra.mxu0 0.0
    %1026 = vmatprep.subr.mxu0 0.0
    %1027 = vmatpush2.msra.mxu0 0.0
    %1028 = vmatprep.subr.mxu0 0.0
    %1029 = vmatpush2.msra.mxu0 0.0
    %1030 = vmatprep.subr.mxu0 0.0
    %1031 = vmatpush2.msra.mxu0 0.0
    %1032 = vmatprep.subr.mxu0 0.0
    %1033 = vmatpush2.msra.mxu0 0.0
    %1034 = vmatprep.subr.mxu0 0.0
    %1035 = vmatpush2.msra.mxu0 0.0
    %1036 = vmatprep.subr.mxu0 0.0
    %1037 = vmatpush2.msra.mxu0 0.0
    %1038 = vmatprep.subr.mxu0 0.0
    %1039 = vmatpush2.msra.mxu0 0.0
    %1040 = vmatprep.subr.mxu0 0.0
    %1041 = vmatpush2.msra.mxu0 0.0
    %1042 = vmatprep.subr.mxu0 0.0
    %1043 = vmatpush2.msra.mxu0 0.0
    %1044 = vmatprep.subr.mxu0 0.0
    %1045 = vmatpush2.msra.mxu0 0.0
    %1046 = vmatprep.subr.mxu0 0.0
    %1047 = vmatpush2.msra.mxu0 0.0
    %1048 = vmatprep.subr.mxu0 0.0
    %1049 = vmatpush2.msra.mxu0 0.0
    %1050 = vmatprep.subr.mxu0 0.0
    %1051 = vmatpush2.msra.mxu0 0.0
    %1052 = vmatprep.subr.mxu0 0.0
    %1053 = vmatpush2.msra.mxu0 0.0
    %1054 = vmatprep.subr.mxu0 0.0
    %1055 = vmatpush2.msra.mxu0 0.0
    %1056 = vmatprep.mubr.f32.mxu0 0.0
    %1057 = vmatmul.mubr.f32.gmra.mxu0 %v990
    %v1058 = vpop.f32.mrf.mxu0
    %v1059 = vadd.f32 0.0, %v1058
    %v1060 = vpop.f32.mrf.mxu0
    %1061 = vdwg.mxu0
    %v1062 = vadd.f32 %v226, %v1059
    %v1063 = vxor.u32 %v1062, 2147483648
    %v1064 = vmul.f32 %v1063, 1.442695
    %v1065 = vpow.pop %v1064
    %v1066 = vadd.f32 %v1065, 1.0
    %v1067 = vrcp.pop %v1066
    %v1068 = vmul.f32 1.0, %v1067
    %v1069 = vtanh.pop %v1062
    %v1070 = vmul.f32 %v1068, %v973
    %1072 = vrot.lane.b32.xlu0 %v1069, 64
    %v1073 = vpop.permute.xlu0 %1072
    %v1075 = vmul.f32 %v1068, %v1073
    %1077 = vrot.lane.b32.xlu0 %v1075, 32
    %v1078 = vpop.permute.xlu0 %1077
    %v1080 = vadd.f32 %v1070, %v1078
    %v1081 = vtanh.pop %v1080
    %1083 = vrot.lane.b32.xlu0 %v1081, 64
    %v1084 = vpop.permute.xlu0 %1083
    %v1086 = vmul.f32 %v1068, %v1084
    %v1087 = vld [vmem:[%s4] sm:$0xff]
    %v1088 = vld [vmem:[%s4 + $0x8] sm:$0xff]
    %v1089 = vld [vmem:[%s4 + $0x10] sm:$0xff]
    %v1090 = vld [vmem:[%s4 + $0x18] sm:$0xff]
    %v1091 = vld [vmem:[%s5] sm:$0x1]
    %v1093 = vlaneseq
    %v1094 = vshrl.u32 %v1093, 7
    %v1095 = vsub.s32 0, %v1094
    %v1096 = vrot.slane %v1091, %v1095
    %v1100 = vunpack.c.l.s4 1983009808
    %v1101 = vunpack.c.0.s8 %v1100
    %v1102 = vlaneseq
    %v1103 = vshrl.u32 %v1102, 7
    %v1104 = vsub.s32 %v1101, %v1103
    %v1105 = vrot.slane %v1086, %v1104
    %1106 = vrot.lane.b32.xlu0 %v1105, 32
    %v1107 = vpop.permute.xlu0 %1106
    %v1108 = vsel %vm239, %v1107, 0
    %1110 = vmatprep.subr.mxu0 0.0
    %1111 = vmatpush1.msra.mxu0 0.0
    %1112 = vmatprep.subr.mxu0 0.0
    %1113 = vmatpush1.msra.mxu0 0.0
    %1114 = vmatprep.subr.mxu0 0.0
    %1115 = vmatpush1.msra.mxu0 0.0
    %1116 = vmatprep.subr.mxu0 0.0
    %1117 = vmatpush1.msra.mxu0 0.0
    %1118 = vmatprep.subr.mxu0 0.0
    %1119 = vmatpush1.msra.mxu0 0.0
    %1120 = vmatprep.subr.mxu0 0.0
    %1121 = vmatpush1.msra.mxu0 0.0
    %1122 = vmatprep.subr.mxu0 0.0
    %1123 = vmatpush1.msra.mxu0 0.0
    %1124 = vmatprep.subr.mxu0 0.0
    %1125 = vmatpush1.msra.mxu0 0.0
    %1126 = vmatprep.subr.mxu0 0.0
    %1127 = vmatpush1.msra.mxu0 0.0
    %1128 = vmatprep.subr.mxu0 0.0
    %1129 = vmatpush1.msra.mxu0 0.0
    %1130 = vmatprep.subr.mxu0 0.0
    %1131 = vmatpush1.msra.mxu0 0.0
    %1132 = vmatprep.subr.mxu0 0.0
    %1133 = vmatpush1.msra.mxu0 0.0
    %1134 = vmatprep.subr.mxu0 0.0
    %1135 = vmatpush1.msra.mxu0 %v1090
    %1136 = vmatprep.subr.mxu0 0.0
    %1137 = vmatpush1.msra.mxu0 %v1089
    %1138 = vmatprep.subr.mxu0 0.0
    %1139 = vmatpush1.msra.mxu0 %v1088
    %1140 = vmatprep.subr.mxu0 0.0
    %1141 = vmatpush1.msra.mxu0 %v1087
    %1142 = vmatprep.subr.mxu0 0.0
    %1143 = vmatpush2.msra.mxu0 0.0
    %1144 = vmatprep.subr.mxu0 0.0
    %1145 = vmatpush2.msra.mxu0 0.0
    %1146 = vmatprep.subr.mxu0 0.0
    %1147 = vmatpush2.msra.mxu0 0.0
    %1148 = vmatprep.subr.mxu0 0.0
    %1149 = vmatpush2.msra.mxu0 0.0
    %1150 = vmatprep.subr.mxu0 0.0
    %1151 = vmatpush2.msra.mxu0 0.0
    %1152 = vmatprep.subr.mxu0 0.0
    %1153 = vmatpush2.msra.mxu0 0.0
    %1154 = vmatprep.subr.mxu0 0.0
    %1155 = vmatpush2.msra.mxu0 0.0
    %1156 = vmatprep.subr.mxu0 0.0
    %1157 = vmatpush2.msra.mxu0 0.0
    %1158 = vmatprep.subr.mxu0 0.0
    %1159 = vmatpush2.msra.mxu0 0.0
    %1160 = vmatprep.subr.mxu0 0.0
    %1161 = vmatpush2.msra.mxu0 0.0
    %1162 = vmatprep.subr.mxu0 0.0
    %1163 = vmatpush2.msra.mxu0 0.0
    %1164 = vmatprep.subr.mxu0 0.0
    %1165 = vmatpush2.msra.mxu0 0.0
    %1166 = vmatprep.subr.mxu0 0.0
    %1167 = vmatpush2.msra.mxu0 0.0
    %1168 = vmatprep.subr.mxu0 0.0
    %1169 = vmatpush2.msra.mxu0 0.0
    %1170 = vmatprep.subr.mxu0 0.0
    %1171 = vmatpush2.msra.mxu0 0.0
    %1172 = vmatprep.subr.mxu0 0.0
    %1173 = vmatpush2.msra.mxu0 0.0
    %1174 = vmatprep.mubr.f32.mxu0 0.0
    %1175 = vmatmul.mubr.f32.gmra.mxu0 %v1108
    %v1176 = vpop.f32.mrf.mxu0
    %v1177 = vadd.f32 %v1096, %v1176
    %v1178 = vpop.f32.mrf.mxu0
    %1179 = vdwg.mxu0
    %vm1180 = vcmask 58368
    %1181 = vst.msk [vmem:[#allocation7] sm:$0x3] %vm1180, %v1177
    // Predicated region
    $region34: #{tpu_custom_call.1} parent=1 // pred_check
      _
    $region35: #{tpu_custom_call.1} parent=1 // pred_check_branch
      %1183 = sbr.rel (0) target = $region37
    $region36: #{tpu_custom_call.1} parent=1 // pred_region
      %s1185 = ssub.s32 32, 32
      %1186 = vsyncadd [#allocation4], %s1185
      %s1188 = sshll.u32 [#allocation7], 4
      %s1189 = int_to_ptr.vmem [resolvable:$true] %s1188
      %1191 = dma.vmem_to_hbm [thread:$0]  %s1189, 32, %s6, [#allocation4]
    $region37: #{tpu_custom_call.1} parent=1 // pred_fallthru
      _
    // Predicated region
    $region38: #{tpu_custom_call.1} parent=1 // pred_check
      _
    $region39: #{tpu_custom_call.1} parent=1 // pred_check_branch
      %1193 = sbr.rel (0) target = $region41
    $region40: #{tpu_custom_call.1} parent=1 // pred_region
      %1194 = dma.done [#allocation4], 32
    $region41: #{tpu_custom_call.1} parent=1 // pred_fallthru
      _
    %1195 = vsyncpa [#allocation3], 1
    %1196 = vsyncpa [#allocation6], 1
    %1197 = vsyncpa [#allocation4], 1

</llo_original>
